<compile_context>
chip_gen: v6e
topology: v6e:2x2x1
jax: 0.10.0
libtpu: 0.0.40
codegen_flags: <defaults>
</compile_context>

<pallas_src>
import jax
import jax.numpy as jnp
from jax.experimental import pallas as pl
from jax.experimental.pallas import tpu as pltpu


def attmil_kernel(x_ref, w1_ref, b1_ref, wvu_ref, bvu_ref, ww_ref, out_ref):
    TBL, Din = x_ref.shape           # (tb*L, Din)  -- flattened rows
    TB, L_out = out_ref.shape        # (tb, round_up(L, 128))
    L = TBL // TB
    hd2 = ww_ref.shape[1]

    # bf16 cast happens here (not in the wrapper), so x crosses HBM once, f32.
    x_bf = x_ref[...].astype(jnp.bfloat16)

    # feature_extractor: Conv1d(inputd, hd1, 1) + ReLU  (k=1 conv == matmul).
    h = jnp.dot(x_bf, w1_ref[...],
                preferred_element_type=jnp.float32) + b1_ref[...]
    h = jnp.maximum(h, 0.0)                                     # (TBL, hd1) f32

    # attention_V | attention_U fused into a single (hd1, 2*hd2) matmul.
    g = jnp.dot(h.astype(jnp.bfloat16), wvu_ref[...],
                preferred_element_type=jnp.float32) + bvu_ref[...]
    a_v = jnp.tanh(g[:, :hd2])
    a_u = jax.nn.sigmoid(g[:, hd2:])
    gated = a_v * a_u                                           # (TBL, hd2) f32

    # attention_weights: Conv1d(hd2, 1, 1) as a VPU multiply + lane reduce.
    # (Its scalar bias is dropped: the softmax over L is shift-invariant.)
    weighted = (gated * ww_ref[...]).reshape(TB, L, hd2)        # small relayout
    logits = jnp.sum(weighted, axis=-1)                         # (TB, L), L on lanes

    # Pad the lane axis up to L_out (multiple of 128) so the softmax runs on
    # dense vregs and the output store is an unmasked, lane-dense vst.
    if L_out > L:
        pad = jnp.full((TB, L_out - L), -1e30, dtype=jnp.float32)
        logits = jnp.concatenate([logits, pad], axis=-1)        # (TB, L_out)

    # Numerically stabilized softmax over L (padded lanes underflow to 0).
    m = jnp.max(logits, axis=-1, keepdims=True)
    e = jnp.exp(logits - m)
    s = jnp.sum(e, axis=-1, keepdims=True)
    inv = 1.0 / s                                               # exact; (TB, 1) only
    out_ref[...] = (e * inv).astype(out_ref.dtype)

    # NOTE: if tb*L grows large enough that h/g/gated spills show up in the
    # bundle dump, wrap the body in a lax.fori_loop over row chunks (bounds
    # live ranges); not done pre-emptively per the review.


def _choose_tb(B, L, Din, x_block_budget_bytes=4 << 20):
    """Batch rows per grid step.

    Targets an x block of ~x_block_budget_bytes (f32, double-buffered by the
    pipeline) while keeping BlockSpecs aligned:
      * tb always divides B  -> no padded / partial tail block, no jnp.pad,
      * tb % 8 == 0 (or tb == B) -> the out block's sublane dim and the
        flattened x block's leading dim stay (8, 128)-tileable.
    Prefers >= 2 grid steps so both v7x TensorCores get work.
    """
    bytes_per_row = max(L * Din * 4, 1)
    cap = max(1, min(B, x_block_budget_bytes // bytes_per_row))
    candidates = [tb for tb in range(cap, 0, -1)
                  if B % tb == 0 and (tb == B or tb % 8 == 0)]
    if candidates:
        multi = [tb for tb in candidates if B // tb >= 2]
        return multi[0] if multi else candidates[0]
    # No aligned divisor under the budget; fall back to any divisor rather
    # than pulling the whole batch into VMEM.
    for tb in range(cap, 0, -1):
        if B % tb == 0:
            return tb
    return B


def _vmem_limit_bytes():
    """Raise the scoped-VMEM limit (defaults: 16 MiB v5e / 32 MiB v6e, v7x) so
    larger double-buffered x blocks compile, capped well under physical
    capacity (128 MiB v5e/v6e -> 96 MiB, 64 MiB v7x -> 48 MiB)."""
    try:
        cap = pltpu.get_tpu_info().vmem_capacity_bytes or (64 << 20)
    except Exception:
        cap = 64 << 20   # conservative: v7x physical VMEM
    return int(min(cap * 3 // 4, 112 << 20))


def attmil_forward(x_blc, params, *, x_block_budget_bytes=4 << 20):
    """x_blc: (B, L, inputd) float32 (channels-last). Returns (B, L, 1) f32."""
    B, L, Din = x_blc.shape
    w1, b1, wv, bv, wu, bu, ww, bw = params
    hd1 = w1.shape[1]
    hd2 = wv.shape[1]

    # Fuse V and U projections into a single weight / bias (one MXU pass).
    wvu_bf = jnp.concatenate([wv, wu], axis=1).astype(jnp.bfloat16)  # (hd1, 2*hd2)
    bvu = jnp.concatenate([bv, bu], axis=1)                          # (1, 2*hd2) f32
    w1_bf = w1.astype(jnp.bfloat16)
    ww_row = ww.reshape(1, hd2)                                      # lane-broadcast row
    del bw  # scalar bias on the logits cancels exactly in the softmax over L

    # x stays f32 in HBM; flatten (B, L) -> B*L rows (contiguous-dim merge,
    # no data movement).  The bf16 cast happens inside the kernel.
    x2d = x_blc.reshape(B * L, Din)

    tb = _choose_tb(B, L, Din, x_block_budget_bytes)
    n_blocks = B // tb
    L_out = -(-L // 128) * 128            # lane-dense output width (>=128)

    # TODO(synk): for very large MIL bags (L*Din blocks that bust the v7x
    # 64 MiB VMEM budget), tile L inside the kernel with an online softmax
    # instead of pulling the whole (tb*L, Din) slab per step.

    full2d = lambda a: pl.BlockSpec(a.shape, lambda b: (0, 0))

    out2d = pl.pallas_call(
        attmil_kernel,
        out_shape=jax.ShapeDtypeStruct((B, L_out), jnp.float32),
        grid_spec=pltpu.PrefetchScalarGridSpec(
            num_scalar_prefetch=0,
            grid=(n_blocks,),
            in_specs=[
                pl.BlockSpec((tb * L, Din), lambda b: (b, 0)),   # x (streaming)
                full2d(w1_bf), full2d(b1),                       # W1, b1
                full2d(wvu_bf), full2d(bvu),                     # Wv|Wu, bv|bu
                full2d(ww_row),                                  # ww row
            ],
            out_specs=pl.BlockSpec((tb, L_out), lambda b: (b, 0)),  # lane-dense
        ),
        compiler_params=pltpu.CompilerParams(
            dimension_semantics=("parallel",),                   # megacore-friendly
            vmem_limit_bytes=_vmem_limit_bytes()),
    )(x2d, w1_bf, b1, wvu_bf, bvu, ww_row)

    # Restore PyTorch's (B, L, 1) layout; padded lanes (exactly 0) sliced off.
    return out2d[:, :L, None]


def init_params(key, inputd=32, hd1=16, hd2=16):
    ks = jax.random.split(key, 8)
    scale = 0.1
    w1 = scale * jax.random.normal(ks[0], (inputd, hd1), jnp.float32)
    b1 = scale * jax.random.normal(ks[1], (1, hd1), jnp.float32)
    wv = scale * jax.random.normal(ks[2], (hd1, hd2), jnp.float32)
    bv = scale * jax.random.normal(ks[3], (1, hd2), jnp.float32)
    wu = scale * jax.random.normal(ks[4], (hd1, hd2), jnp.float32)
    bu = scale * jax.random.normal(ks[5], (1, hd2), jnp.float32)
    ww = scale * jax.random.normal(ks[6], (hd2, 1), jnp.float32)
    bw = scale * jax.random.normal(ks[7], (1, 1), jnp.float32)
    return (w1, b1, wv, bv, wu, bu, ww, bw)


def attmil_ref(x_blc, params):
    """Pure-JAX f32 reference with identical semantics (incl. bw bias)."""
    w1, b1, wv, bv, wu, bu, ww, bw = params
    h = jnp.maximum(x_blc @ w1 + b1, 0.0)
    a_v = jnp.tanh(h @ wv + bv)
    a_u = jax.nn.sigmoid(h @ wu + bu)
    logits = (a_v * a_u) @ ww + bw                 # (B, L, 1)
    return jax.nn.softmax(logits, axis=1)


if __name__ == "__main__":
    B, L, inputd, hd1, hd2 = 2, 8, 32, 16, 16
    key = jax.random.PRNGKey(0)
    k_x, k_p = jax.random.split(key)

    # PyTorch forward takes x as (B, inputd, L); move to channels-last.
    x_ncl = jax.random.normal(k_x, (B, inputd, L), jnp.float32)
    x_blc = jnp.transpose(x_ncl, (0, 2, 1))        # (B, L, inputd)

    params = init_params(k_p, inputd, hd1, hd2)

    fwd = jax.jit(lambda x: attmil_forward(x, params))
    out = jax.block_until_ready(fwd(x_blc))

    ref = attmil_ref(x_blc, params)
    assert out.shape == (B, L, 1)
    # bf16 matmul operands (f32 accumulation) => slightly loosened tolerances.
    assert jnp.allclose(out, ref, atol=2e-2, rtol=2e-2)
    assert jnp.allclose(jnp.sum(out, axis=1), 1.0, atol=1e-3)

    print("KERNEL_OK")
</pallas_src>

<mosaic_0001>
module attributes {stable_mosaic.version = 11 : i64} {
  func.func @attmil_kernel(%arg0: i32, %arg1: memref<16x32xf32, #tpu.memory_space<vmem>>, %arg2: memref<32x16xbf16, #tpu.memory_space<vmem>>, %arg3: memref<1x16xf32, #tpu.memory_space<vmem>>, %arg4: memref<16x32xbf16, #tpu.memory_space<vmem>>, %arg5: memref<1x32xf32, #tpu.memory_space<vmem>>, %arg6: memref<1x16xf32, #tpu.memory_space<vmem>>, %arg7: memref<2x128xf32, #tpu.memory_space<vmem>>) attributes {dimension_semantics = [#tpu.dimension_semantics<parallel>], iteration_bounds = array<i64: 1>, scalar_prefetch = 0 : i64, scratch_operands = 0 : i64, tpu.core_type = #tpu.core_type<tc>, window_params = [{transform_indices = @transform_0, window_bounds = array<i64: 16, 32>}, {pipeline_mode = #tpu.pipeline_mode<synchronous>, transform_indices = @transform_1, window_bounds = array<i64: 32, 16>}, {pipeline_mode = #tpu.pipeline_mode<synchronous>, transform_indices = @transform_2, window_bounds = array<i64: 1, 16>}, {pipeline_mode = #tpu.pipeline_mode<synchronous>, transform_indices = @transform_3, window_bounds = array<i64: 16, 32>}, {pipeline_mode = #tpu.pipeline_mode<synchronous>, transform_indices = @transform_4, window_bounds = array<i64: 1, 32>}, {pipeline_mode = #tpu.pipeline_mode<synchronous>, transform_indices = @transform_5, window_bounds = array<i64: 1, 16>}, {transform_indices = @transform_6, window_bounds = array<i64: 2, 128>}]} {
    %c0 = arith.constant 0 : index
    %c0_0 = arith.constant 0 : index
    %0 = vector.load %arg1[%c0, %c0_0] : memref<16x32xf32, #tpu.memory_space<vmem>>, vector<16x32xf32>
    %1 = arith.truncf %0 : vector<16x32xf32> to vector<16x32xbf16>
    %c0_1 = arith.constant 0 : index
    %c0_2 = arith.constant 0 : index
    %2 = vector.load %arg2[%c0_1, %c0_2] : memref<32x16xbf16, #tpu.memory_space<vmem>>, vector<32x16xbf16>
    %cst = arith.constant dense<0.000000e+00> : vector<16x16xf32>
    %3 = tpu.matmul %1, %2, %cst {dimension_numbers = #tpu.dot_dimension_numbers<[1], [0], [0], [1], [0, 0, 1, 1], [], []>} : vector<16x32xbf16>, vector<32x16xbf16>, vector<16x16xf32> -> vector<16x16xf32>
    %c0_3 = arith.constant 0 : index
    %c0_4 = arith.constant 0 : index
    %4 = vector.load %arg3[%c0_3, %c0_4] : memref<1x16xf32, #tpu.memory_space<vmem>>, vector<1x16xf32>
    %5 = vector.broadcast %4 : vector<1x16xf32> to vector<16x16xf32>
    %6 = arith.addf %3, %5 : vector<16x16xf32>
    %cst_5 = arith.constant 0.000000e+00 : f32
    %7 = vector.broadcast %cst_5 : f32 to vector<16x16xf32>
    %8 = arith.maximumf %6, %7 : vector<16x16xf32>
    %9 = arith.truncf %8 : vector<16x16xf32> to vector<16x16xbf16>
    %c0_6 = arith.constant 0 : index
    %c0_7 = arith.constant 0 : index
    %10 = vector.load %arg4[%c0_6, %c0_7] : memref<16x32xbf16, #tpu.memory_space<vmem>>, vector<16x32xbf16>
    %cst_8 = arith.constant dense<0.000000e+00> : vector<16x32xf32>
    %11 = tpu.matmul %9, %10, %cst_8 {dimension_numbers = #tpu.dot_dimension_numbers<[1], [0], [0], [1], [0, 0, 1, 1], [], []>} : vector<16x16xbf16>, vector<16x32xbf16>, vector<16x32xf32> -> vector<16x32xf32>
    %c0_9 = arith.constant 0 : index
    %c0_10 = arith.constant 0 : index
    %12 = vector.load %arg5[%c0_9, %c0_10] : memref<1x32xf32, #tpu.memory_space<vmem>>, vector<1x32xf32>
    %13 = vector.broadcast %12 : vector<1x32xf32> to vector<16x32xf32>
    %14 = arith.addf %11, %13 : vector<16x32xf32>
    %15 = vector.extract_strided_slice %14 {offsets = [0, 0], sizes = [16, 16], strides = [1, 1]} : vector<16x32xf32> to vector<16x16xf32>
    %16 = math.tanh %15 : vector<16x16xf32>
    %17 = vector.extract_strided_slice %14 {offsets = [0, 16], sizes = [16, 16], strides = [1, 1]} : vector<16x32xf32> to vector<16x16xf32>
    %18 = arith.negf %17 : vector<16x16xf32>
    %19 = math.exp %18 : vector<16x16xf32>
    %cst_11 = arith.constant 1.000000e+00 : f32
    %20 = vector.broadcast %cst_11 : f32 to vector<16x16xf32>
    %21 = arith.addf %20, %19 : vector<16x16xf32>
    %22 = arith.divf %20, %21 : vector<16x16xf32>
    %23 = arith.mulf %16, %22 : vector<16x16xf32>
    %c0_12 = arith.constant 0 : index
    %c0_13 = arith.constant 0 : index
    %24 = vector.load %arg6[%c0_12, %c0_13] : memref<1x16xf32, #tpu.memory_space<vmem>>, vector<1x16xf32>
    %25 = vector.broadcast %24 : vector<1x16xf32> to vector<16x16xf32>
    %26 = arith.mulf %23, %25 : vector<16x16xf32>
    %27 = vector.shape_cast %26 : vector<16x16xf32> to vector<2x8x16xf32>
    %cst_14 = arith.constant dense<0.000000e+00> : vector<2x8xf32>
    %28 = vector.multi_reduction <add>, %27, %cst_14 [2] : vector<2x8x16xf32> to vector<2x8xf32>
    %cst_15 = arith.constant -1.000000e+30 : f32
    %29 = vector.broadcast %cst_15 : f32 to vector<2x120xf32>
    %30 = tpu.concatenate %28, %29 in 1 : vector<2x8xf32>, vector<2x120xf32> -> vector<2x128xf32>
    %cst_16 = arith.constant dense<0xFF800000> : vector<2xf32>
    %31 = vector.multi_reduction <maximumf>, %30, %cst_16 [1] : vector<2x128xf32> to vector<2xf32>
    %32 = vector.shape_cast %31 : vector<2xf32> to vector<2x1xf32>
    %33 = vector.broadcast %32 : vector<2x1xf32> to vector<2x128xf32>
    %34 = arith.subf %30, %33 : vector<2x128xf32>
    %35 = math.exp %34 : vector<2x128xf32>
    %cst_17 = arith.constant dense<0.000000e+00> : vector<2xf32>
    %36 = vector.multi_reduction <add>, %35, %cst_17 [1] : vector<2x128xf32> to vector<2xf32>
    %37 = vector.shape_cast %36 : vector<2xf32> to vector<2x1xf32>
    %cst_18 = arith.constant 1.000000e+00 : f32
    %38 = vector.broadcast %cst_18 : f32 to vector<2x1xf32>
    %39 = arith.divf %38, %37 : vector<2x1xf32>
    %40 = vector.broadcast %39 : vector<2x1xf32> to vector<2x128xf32>
    %41 = arith.mulf %35, %40 : vector<2x128xf32>
    %c0_19 = arith.constant 0 : index
    %c0_20 = arith.constant 0 : index
    %42 = vector.load %arg7[%c0_19, %c0_20] : memref<2x128xf32, #tpu.memory_space<vmem>>, vector<2x128xf32>
    tpu.vector_store %arg7[%c0_19, %c0_20], %41 {strides = array<i32>} : memref<2x128xf32, #tpu.memory_space<vmem>>, vector<2x128xf32>,
    return
  }
  func.func @transform_0(%arg0: i32) -> (i32, i32) {
    %c0_i32 = arith.constant 0 : i32
    %c0_i32_0 = arith.constant 0 : i32
    return %arg0, %c0_i32 : i32, i32
  }
  func.func @transform_1(%arg0: i32) -> (i32, i32) {
    %c0_i32 = arith.constant 0 : i32
    %c0_i32_0 = arith.constant 0 : i32
    %c0_i32_1 = arith.constant 0 : i32
    return %c0_i32, %c0_i32_0 : i32, i32
  }
  func.func @transform_2(%arg0: i32) -> (i32, i32) {
    %c0_i32 = arith.constant 0 : i32
    %c0_i32_0 = arith.constant 0 : i32
    %c0_i32_1 = arith.constant 0 : i32
    return %c0_i32, %c0_i32_0 : i32, i32
  }
  func.func @transform_3(%arg0: i32) -> (i32, i32) {
    %c0_i32 = arith.constant 0 : i32
    %c0_i32_0 = arith.constant 0 : i32
    %c0_i32_1 = arith.constant 0 : i32
    return %c0_i32, %c0_i32_0 : i32, i32
  }
  func.func @transform_4(%arg0: i32) -> (i32, i32) {
    %c0_i32 = arith.constant 0 : i32
    %c0_i32_0 = arith.constant 0 : i32
    %c0_i32_1 = arith.constant 0 : i32
    return %c0_i32, %c0_i32_0 : i32, i32
  }
  func.func @transform_5(%arg0: i32) -> (i32, i32) {
    %c0_i32 = arith.constant 0 : i32
    %c0_i32_0 = arith.constant 0 : i32
    %c0_i32_1 = arith.constant 0 : i32
    return %c0_i32, %c0_i32_0 : i32, i32
  }
  func.func @transform_6(%arg0: i32) -> (i32, i32) {
    %c0_i32 = arith.constant 0 : i32
    %c0_i32_0 = arith.constant 0 : i32
    return %arg0, %c0_i32 : i32, i32
  }
}

</mosaic_0001>

<llo_original>
// kernel: _lambda_.1
$region0: #{_lambda_.1}
  #allocation0 [shape = 'u32[]', space=smem, size = 0x4, offset = 0x4, fixed_abs, tag = 'smem constant byte address 0x4 - core index']
  #allocation1 [shape = 'u32[144,128]{1,0:T(1,128)}', space=vmem, size = 0x12000, scoped, tag = 'internal scratch']
  %s0 = inlined_call_operand.hbm [shape: f32[16,32], index: 0, kind: input, shape index: {}]
  %s1 = inlined_call_operand.hbm [shape: bf16[32,16], index: 1, kind: input, shape index: {}]
  %s2 = inlined_call_operand.vmem [shape: f32[1,16], index: 2, kind: input, shape index: {}]
  %s3 = inlined_call_operand.hbm [shape: bf16[16,32], index: 3, kind: input, shape index: {}]
  %s4 = inlined_call_operand.vmem [shape: f32[1,32], index: 4, kind: input, shape index: {}]
  %s5 = inlined_call_operand.vmem [shape: f32[1,16], index: 5, kind: input, shape index: {}]
  %s6 = inlined_call_operand.hbm [shape: f32[2,128], index: 6, kind: output, shape index: {}]
  %s7 = sld [smem:[#allocation0]]
  $region46: #{_lambda_.1} parent=0
    _
  %s9 = ssub.s32 1, %s7
  %s10 = scalar_select 0, %s9, %s7
  $region1: #{_lambda_.1} parent=0
    #allocation2 [shape = 'u8[8192]{0}', space=vmem, size = 0x2000, scoped, tag = 'input window, operand 0, single buffered']
    #allocation3 [shape = 's32[1]{0}', space=sflag, size = 0x4, scoped, tag = 'scoped memory for _lambda_.1']
    #allocation4 [shape = 's32[1]{0}', space=sflag, size = 0x4, scoped, tag = 'scoped memory for _lambda_.1']
    #allocation5 [shape = 'u8[8192]{0}', space=vmem, size = 0x2000, scoped, tag = 'input window, operand 1, single buffered']
    #allocation6 [shape = 's32[1]{0}', space=sflag, size = 0x4, scoped, tag = 'scoped memory for _lambda_.1']
    #allocation7 [shape = 'u8[4096]{0}', space=vmem, size = 0x1000, scoped, tag = 'input window, operand 3, single buffered']
    #allocation8 [shape = 'u8[1024]{0}', space=vmem, size = 0x400, scoped, tag = 'output window, operand 0, single buffered']
    %11 = vsyncpa [#allocation3], 0
    %12 = vsyncpa [#allocation6], 0
    %13 = vsyncpa [#allocation4], 0
    // Predicated region
    $region2: #{_lambda_.1} parent=1 // pred_check
      _
    $region3: #{_lambda_.1} parent=1 // pred_check_branch
      %15 = sbr.rel (0) target = $region5
    $region4: #{_lambda_.1} parent=1 // pred_region
      %s17 = ssub.s32 256, 256
      %18 = vsyncadd [#allocation3], %s17
      %s19 = sshll.u32 [#allocation2], 4
      %s20 = int_to_ptr.vmem [resolvable:$true] %s19
      %25 = dma.hbm_to_vmem [thread:$0]  %s0, 256, %s20, [#allocation3], 128, 128, 8
    $region5: #{_lambda_.1} parent=1 // pred_fallthru
      _
    // Predicated region
    $region6: #{_lambda_.1} parent=1 // pred_check
      _
    $region7: #{_lambda_.1} parent=1 // pred_check_branch
      %27 = sbr.rel (0) target = $region9
    $region8: #{_lambda_.1} parent=1 // pred_region
      %s29 = ssub.s32 256, 256
      %30 = vsyncadd [#allocation6], %s29
      %s31 = sshll.u32 [#allocation5], 4
      %s32 = int_to_ptr.vmem [resolvable:$true] %s31
      %37 = dma.hbm_to_vmem [thread:$0]  %s1, 256, %s32, [#allocation6], 64, 64, 4
    $region9: #{_lambda_.1} parent=1 // pred_fallthru
      _
    // Predicated region
    $region10: #{_lambda_.1} parent=1 // pred_check
      _
    $region11: #{_lambda_.1} parent=1 // pred_check_branch
      %39 = sbr.rel (0) target = $region13
    $region12: #{_lambda_.1} parent=1 // pred_region
      _
    $region13: #{_lambda_.1} parent=1 // pred_fallthru
      _
    // Predicated region
    $region14: #{_lambda_.1} parent=1 // pred_check
      _
    $region15: #{_lambda_.1} parent=1 // pred_check_branch
      %41 = sbr.rel (0) target = $region17
    $region16: #{_lambda_.1} parent=1 // pred_region
      %s43 = ssub.s32 128, 128
      %44 = vsyncadd [#allocation6], %s43
      %s45 = sshll.u32 [#allocation7], 4
      %s46 = int_to_ptr.vmem [resolvable:$true] %s45
      %51 = dma.hbm_to_vmem [thread:$0]  %s3, 128, %s46, [#allocation6], 64, 64, 4
    $region17: #{_lambda_.1} parent=1 // pred_fallthru
      _
    // Predicated region
    $region18: #{_lambda_.1} parent=1 // pred_check
      _
    $region19: #{_lambda_.1} parent=1 // pred_check_branch
      %53 = sbr.rel (0) target = $region21
    $region20: #{_lambda_.1} parent=1 // pred_region
      _
    $region21: #{_lambda_.1} parent=1 // pred_fallthru
      _
    // Predicated region
    $region22: #{_lambda_.1} parent=1 // pred_check
      _
    $region23: #{_lambda_.1} parent=1 // pred_check_branch
      %55 = sbr.rel (0) target = $region25
    $region24: #{_lambda_.1} parent=1 // pred_region
      _
    $region25: #{_lambda_.1} parent=1 // pred_fallthru
      _
    // Predicated region
    $region26: #{_lambda_.1} parent=1 // pred_check
      _
    $region27: #{_lambda_.1} parent=1 // pred_check_branch
      %57 = sbr.rel (0) target = $region29
    $region28: #{_lambda_.1} parent=1 // pred_region
      %58 = dma.done [#allocation3], 256
    $region29: #{_lambda_.1} parent=1 // pred_fallthru
      _
    // Predicated region
    $region30: #{_lambda_.1} parent=1 // pred_check
      _
    $region31: #{_lambda_.1} parent=1 // pred_check_branch
      %60 = sbr.rel (0) target = $region33
    $region32: #{_lambda_.1} parent=1 // pred_region
      %61 = dma.done [#allocation6], 256
    $region33: #{_lambda_.1} parent=1 // pred_fallthru
      _
    // Predicated region
    $region34: #{_lambda_.1} parent=1 // pred_check
      _
    $region35: #{_lambda_.1} parent=1 // pred_check_branch
      %63 = sbr.rel (0) target = $region37
    $region36: #{_lambda_.1} parent=1 // pred_region
      %64 = dma.done [#allocation6], 128
    $region37: #{_lambda_.1} parent=1 // pred_fallthru
      _
    %v66 = vld [vmem:[#allocation2] sm:$0xff]
    %v67 = vld [vmem:[#allocation2 + $0x8] sm:$0xff]
    %v68 = vpack.c.bf16 %v67, %v66
    %v69 = vld [vmem:[#allocation5] sm:$0xf]
    %v70 = vld [vmem:[#allocation5 + $0x4] sm:$0xf]
    %v71 = vld [vmem:[#allocation5 + $0x8] sm:$0xf]
    %v72 = vld [vmem:[#allocation5 + $0xc] sm:$0xf]
    %v73 = vld [vmem:[%s2] sm:$0x1]
    %v75 = vlaneseq
    %v76 = vshrl.u32 %v75, 7
    %v77 = vsub.s32 0, %v76
    %v78 = vrot.slane %v73, %v77
    %v84 = vunpack.c.l.b16 %v69
    %v85 = vunpack.c.l.b16 %v70
    %v86 = vunpack.c.l.b16 %v71
    %v87 = vunpack.c.l.b16 %v72
    %v88 = vpack.c.b16 %v85, %v84
    %v89 = vpack.c.b16 %v87, %v86
    %vm92 = vcmask 261120
    %v94 = vsel %vm92, %v68, 0
    %96 = vmatprep.subr.bf16.mxu0 0
    %97 = vmatpush1.bf16.msra.mxu0 0
    %98 = vmatprep.subr.bf16.mxu0 0
    %99 = vmatpush1.bf16.msra.mxu0 0
    %100 = vmatprep.subr.bf16.mxu0 0
    %101 = vmatpush1.bf16.msra.mxu0 0
    %102 = vmatprep.subr.bf16.mxu0 0
    %103 = vmatpush1.bf16.msra.mxu0 0
    %104 = vmatprep.subr.bf16.mxu0 0
    %105 = vmatpush1.bf16.msra.mxu0 0
    %106 = vmatprep.subr.bf16.mxu0 0
    %107 = vmatpush1.bf16.msra.mxu0 0
    %108 = vmatprep.subr.bf16.mxu0 0
    %109 = vmatpush1.bf16.msra.mxu0 %v89
    %110 = vmatprep.subr.bf16.mxu0 0
    %111 = vmatpush1.bf16.msra.mxu0 %v88
    %112 = vmatprep.subr.bf16.mxu0 0
    %113 = vmatpush2.bf16.msra.mxu0 0
    %114 = vmatprep.subr.bf16.mxu0 0
    %115 = vmatpush2.bf16.msra.mxu0 0
    %116 = vmatprep.subr.bf16.mxu0 0
    %117 = vmatpush2.bf16.msra.mxu0 0
    %118 = vmatprep.subr.bf16.mxu0 0
    %119 = vmatpush2.bf16.msra.mxu0 0
    %120 = vmatprep.subr.bf16.mxu0 0
    %121 = vmatpush2.bf16.msra.mxu0 0
    %122 = vmatprep.subr.bf16.mxu0 0
    %123 = vmatpush2.bf16.msra.mxu0 0
    %124 = vmatprep.subr.bf16.mxu0 0
    %125 = vmatpush2.bf16.msra.mxu0 0
    %126 = vmatprep.subr.bf16.mxu0 0
    %127 = vmatpush2.bf16.msra.mxu0 0
    %128 = vmatprep.mubr.bf16.mxu0 0
    %129 = vmatmul.mubr.bf16.gmra.mxu0 %v94
    %v130 = vpop.f32.mrf.mxu0
    %v131 = vadd.f32 %v78, %v130
    %v132 = vpop.f32.mrf.mxu0
    %v133 = vpop.f32.mrf.mxu0
    %v134 = vadd.f32 %v78, %v133
    %v135 = vpop.f32.mrf.mxu0
    %136 = vdwg.mxu0
    %v137 = vmax.f32 %v131, 0.0
    %v138 = vmax.f32 %v134, 0.0
    %v139 = vpack.c.bf16 %v138, %v137
    %v140 = vld [vmem:[#allocation7] sm:$0xf]
    %v141 = vld [vmem:[#allocation7 + $0x4] sm:$0xf]
    %v142 = vld [vmem:[%s4] sm:$0x1]
    %v144 = vlaneseq
    %v145 = vshrl.u32 %v144, 7
    %v146 = vsub.s32 0, %v145
    %v147 = vrot.slane %v142, %v146
    %v151 = vunpack.c.l.b16 %v140
    %v152 = vunpack.c.l.b16 %v141
    %v153 = vpack.c.b16 %v152, %v151
    %vm155 = vcmask 130048
    %v157 = vsel %vm155, %v139, 0
    %159 = vmatprep.subr.bf16.mxu0 0
    %160 = vmatpush1.bf16.msra.mxu0 0
    %161 = vmatprep.subr.bf16.mxu0 0
    %162 = vmatpush1.bf16.msra.mxu0 0
    %163 = vmatprep.subr.bf16.mxu0 0
    %164 = vmatpush1.bf16.msra.mxu0 0
    %165 = vmatprep.subr.bf16.mxu0 0
    %166 = vmatpush1.bf16.msra.mxu0 0
    %167 = vmatprep.subr.bf16.mxu0 0
    %168 = vmatpush1.bf16.msra.mxu0 0
    %169 = vmatprep.subr.bf16.mxu0 0
    %170 = vmatpush1.bf16.msra.mxu0 0
    %171 = vmatprep.subr.bf16.mxu0 0
    %172 = vmatpush1.bf16.msra.mxu0 0
    %173 = vmatprep.subr.bf16.mxu0 0
    %174 = vmatpush1.bf16.msra.mxu0 %v153
    %175 = vmatprep.subr.bf16.mxu0 0
    %176 = vmatpush2.bf16.msra.mxu0 0
    %177 = vmatprep.subr.bf16.mxu0 0
    %178 = vmatpush2.bf16.msra.mxu0 0
    %179 = vmatprep.subr.bf16.mxu0 0
    %180 = vmatpush2.bf16.msra.mxu0 0
    %181 = vmatprep.subr.bf16.mxu0 0
    %182 = vmatpush2.bf16.msra.mxu0 0
    %183 = vmatprep.subr.bf16.mxu0 0
    %184 = vmatpush2.bf16.msra.mxu0 0
    %185 = vmatprep.subr.bf16.mxu0 0
    %186 = vmatpush2.bf16.msra.mxu0 0
    %187 = vmatprep.subr.bf16.mxu0 0
    %188 = vmatpush2.bf16.msra.mxu0 0
    %189 = vmatprep.subr.bf16.mxu0 0
    %190 = vmatpush2.bf16.msra.mxu0 0
    %191 = vmatprep.mubr.bf16.mxu0 0
    %192 = vmatmul.mubr.bf16.gmra.mxu0 %v157
    %v193 = vpop.f32.mrf.mxu0
    %v194 = vadd.f32 %v147, %v193
    %v195 = vpop.f32.mrf.mxu0
    %v196 = vpop.f32.mrf.mxu0
    %v197 = vadd.f32 %v147, %v196
    %v198 = vpop.f32.mrf.mxu0
    %199 = vdwg.mxu0
    %v200 = vtanh.pop %v194
    %v201 = vtanh.pop %v197
    %v202 = vxor.u32 %v194, 2147483648
    %v203 = vxor.u32 %v197, 2147483648
    %v204 = vmul.f32 %v202, 1.442695
    %v205 = vpow.pop %v204
    %v206 = vmul.f32 %v203, 1.442695
    %v207 = vpow.pop %v206
    %v208 = vadd.f32 %v205, 1.0
    %v209 = vadd.f32 %v207, 1.0
    %v210 = vrcp.pop %v208
    %v211 = vmul.f32 1.0, %v210
    %v212 = vrcp.pop %v209
    %v213 = vmul.f32 1.0, %v212
    %216 = vrot.lane.b32.xlu0 %v211, 112
    %v217 = vpop.permute.xlu0 %216
    %218 = vrot.lane.b32.xlu0 %v213, 112
    %v219 = vpop.permute.xlu0 %218
    %v222 = vmul.f32 %v200, %v217
    %v223 = vmul.f32 %v201, %v219
    %v224 = vld [vmem:[%s5] sm:$0x1]
    %v226 = vlaneseq
    %v227 = vshrl.u32 %v226, 7
    %v228 = vsub.s32 0, %v227
    %v229 = vrot.slane %v224, %v228
    %v231 = vmul.f32 %v222, %v229
    %v232 = vmul.f32 %v223, %v229
    %v233 = vsel %vm155, %v231, 0.0
    %234 = vadd.xlane.f32.xlu0 %v233
    %v235 = vpop.xlane.xlu0 %234
    %v236 = vsel %vm155, %v232, 0.0
    %237 = vadd.xlane.f32.xlu0 %v236
    %v238 = vpop.xlane.xlu0 %237
    %v241 = vlaneseq
    %v242 = vand.u32 %v241, 127
    %v243 = vlaneseq
    %v244 = vshrl.u32 %v243, 7
    %v245 = vsub.s32 %v242, %v244
    %v246 = vrot.slane %v235, %v245
    %v247 = vlaneseq
    %v248 = vshrl.u32 %v247, 7
    %v249 = vsub.s32 %v242, %v248
    %v250 = vrot.slane %v238, %v249
    %vm251 = vcmask 1041409
    %v252 = vsel %vm251, %v250, %v246
    %vm254 = vcmask 64512
    %v255 = vsel %vm254, %v252, -1e+30
    %vm256 = vcmask 1041408
    %v257 = vsel %vm256, %v255, -inf
    %258 = vmax.xlane.f32.xlu0 %v257
    %v259 = vpop.xlane.xlu0 %258
    %v260 = vsub.f32 %v255, %v259
    %v261 = vmul.f32 %v260, 1.442695
    %v262 = vpow.pop %v261
    %v263 = vsel %vm256, %v262, 0.0
    %264 = vadd.xlane.f32.xlu0 %v263
    %v265 = vpop.xlane.xlu0 %264
    %v266 = vrcp.pop %v265
    %v267 = vmul.f32 1.0, %v266
    %v268 = vmul.f32 %v262, %v267
    %269 = vst [vmem:[#allocation8] sm:$0x3] %v268
    // Predicated region
    $region38: #{_lambda_.1} parent=1 // pred_check
      _
    $region39: #{_lambda_.1} parent=1 // pred_check_branch
      %271 = sbr.rel (0) target = $region41
    $region40: #{_lambda_.1} parent=1 // pred_region
      %s273 = ssub.s32 32, 32
      %274 = vsyncadd [#allocation4], %s273
      %s276 = sshll.u32 [#allocation8], 4
      %s277 = int_to_ptr.vmem [resolvable:$true] %s276
      %279 = dma.vmem_to_hbm [thread:$0]  %s277, 32, %s6, [#allocation4]
    $region41: #{_lambda_.1} parent=1 // pred_fallthru
      _
    // Predicated region
    $region42: #{_lambda_.1} parent=1 // pred_check
      _
    $region43: #{_lambda_.1} parent=1 // pred_check_branch
      %281 = sbr.rel (0) target = $region45
    $region44: #{_lambda_.1} parent=1 // pred_region
      %282 = dma.done [#allocation4], 32
    $region45: #{_lambda_.1} parent=1 // pred_fallthru
      _
    %283 = vsyncpa [#allocation3], 1
    %284 = vsyncpa [#allocation6], 1
    %285 = vsyncpa [#allocation4], 1

</llo_original>
